<compile_context>
chip_gen: v7x
topology: tpu7x:2x2x1
jax: 0.10.0
libtpu: 0.0.40
codegen_flags: <defaults>
</compile_context>

<pallas_src>
import numpy as np
import jax
import jax.numpy as jnp
from jax.experimental import pallas as pl
from jax.experimental.pallas import tpu as pltpu


def _round_up(x, m):
    return ((x + m - 1) // m) * m


def _balanced_tile(full, block, align):
    """Pick a tile size (multiple of `align`, <= ~block) and a padded extent it
    evenly divides, balancing the tiles so padding waste stays small."""
    if full <= block:
        return full, full
    nt = -(-full // block)
    tile = _round_up(-(-full // nt), align)
    tile = min(tile, full)
    nt = -(-full // tile)
    return tile, tile * nt


def _vmem_limit_bytes():
    """~3/4 of physical VMEM, capped at 64 MiB so the same wrapper is safe on
    v7x (64 MiB / TensorCore) as well as v5e / v6e (128 MiB)."""
    cap = 64 * 1024 * 1024
    try:
        cap = int(pltpu.get_tpu_info().vmem_capacity_bytes)
    except Exception:
        pass
    return int(min(64 * 1024 * 1024, max(32 * 1024 * 1024, (3 * cap) // 4)))


def _pad2(x, rows, cols, dtype):
    x = jnp.asarray(x, jnp.float32)
    x = jnp.pad(x, ((0, rows - x.shape[0]), (0, cols - x.shape[1])))
    return x.astype(dtype)


# --------------------------------------------------------------------------- #
# Kernels
# --------------------------------------------------------------------------- #
def _make_fused_kernel(md_resident, tg):
    """Fused single-pass kernel (used only when N fits one tile, so the stage-1
    matmuls + exp run exactly once per (S-tile, G-tile))."""

    def kernel(m_ref, d_ref, a_ref, r_ref, gts_ref, out_ref, acc_ref):
        k = pl.program_id(1)

        @pl.when(k == 0)
        def _init():
            acc_ref[...] = jnp.zeros_like(acc_ref)

        if md_resident:
            # M / (-D) stay fully resident in VMEM; slice the current G tile.
            off = pl.multiple_of(k * tg, tg)
            m = m_ref[pl.ds(off, tg), :]
            d = d_ref[pl.ds(off, tg), :]
        else:
            m = m_ref[...]
            d = d_ref[...]

        # Stage 1: (tg, Tp) @ (Tp, ts) on the MXU, f32 accumulation.
        ma = jnp.dot(m, a_ref[...], preferred_element_type=jnp.float32)
        dr = jnp.dot(d, r_ref[...], preferred_element_type=jnp.float32)
        y = ma * jnp.exp(dr)                       # D pre-negated in wrapper (EUP exp)

        # Stage 2: (N, tg) @ (tg, ts) accumulated into the resident output tile.
        acc_ref[...] += jnp.dot(gts_ref[...], y.astype(gts_ref.dtype),
                                preferred_element_type=jnp.float32)

        @pl.when(k == pl.num_programs(1) - 1)
        def _fin():
            out_ref[...] = acc_ref[...].astype(out_ref.dtype)

    return kernel


def _y_kernel(m_ref, d_ref, a_ref, r_ref, y_ref):
    """Split path, stage 1: one (G-tile, S-tile) block of Y = (M@A)*exp((-D)@R).
    Each block is produced exactly once (no recompute per N-tile / per TC)."""
    ma = jnp.dot(m_ref[...], a_ref[...], preferred_element_type=jnp.float32)
    dr = jnp.dot(d_ref[...], r_ref[...], preferred_element_type=jnp.float32)
    y_ref[...] = (ma * jnp.exp(dr)).astype(y_ref.dtype)


def _gts_matmul_kernel(gts_ref, y_ref, out_ref, acc_ref):
    """Split path, stage 2: tiled matmul out = (diag(bias)@GTS) @ Y with a VMEM
    f32 accumulator over the trailing G (reduction) grid axis."""
    k = pl.program_id(2)

    @pl.when(k == 0)
    def _init():
        acc_ref[...] = jnp.zeros_like(acc_ref)

    acc_ref[...] += jnp.dot(gts_ref[...], y_ref[...],
                            preferred_element_type=jnp.float32)

    @pl.when(k == pl.num_programs(2) - 1)
    def _fin():
        out_ref[...] = acc_ref[...].astype(out_ref.dtype)


# --------------------------------------------------------------------------- #
# Wrapper
# --------------------------------------------------------------------------- #
def torch_solver_forward(M, D, A, R, gene_to_seq, bias, *,
                         block_n=256, block_s=1024, block_g=512,
                         use_bf16=False):
    """Pallas implementation of TorchSolver.forward.

    M, D         : (G, T) float32
    A, R         : (T, S) float32
    gene_to_seq  : (N, G) float32
    bias         : (N,)   float32
    returns      : (N, S) float32
    """
    G, T = M.shape
    T2, S = A.shape
    N, G2 = gene_to_seq.shape
    assert T2 == T and G2 == G and bias.shape[0] == N

    row_align = 16 if use_bf16 else 8          # bf16 packs 16 rows per vreg
    cdt = jnp.bfloat16 if use_bf16 else jnp.float32
    itemsize = jnp.dtype(cdt).itemsize

    # Fold diag(bias) into the gene->sequence matrix:
    #   diag(b) @ (GTS @ Y) == (diag(b) @ GTS) @ Y
    gts_scaled = (jnp.asarray(bias, jnp.float32).reshape(N, 1)
                  * jnp.asarray(gene_to_seq, jnp.float32))

    # TPU-friendly padded shapes; zero padding is exact (padded rows/cols add 0).
    t_pad = _round_up(T, row_align)

    n_full = _round_up(N, row_align)
    tn, n_pad = _balanced_tile(n_full, block_n, row_align)

    s_full = _round_up(S, 128)                 # lane-dense output: >= 128 lanes
    ts, s_pad = _balanced_tile(s_full, block_s, 128)

    g_full = _round_up(G, row_align)
    if g_full <= block_g:
        tg, g_pad = g_full, g_full             # single full-dim G tile
    else:
        tg, g_pad = _balanced_tile(_round_up(G, 128), block_g, 128)

    m_p = _pad2(M, g_pad, t_pad, cdt)
    d_p = _pad2(-jnp.asarray(D, jnp.float32), g_pad, t_pad, cdt)   # pre-negated
    a_p = _pad2(A, t_pad, s_pad, cdt)
    r_p = _pad2(R, t_pad, s_pad, cdt)
    gts_p = _pad2(gts_scaled, n_pad, g_pad, cdt)

    vmem_limit = _vmem_limit_bytes()
    num_n = n_pad // tn

    if num_n == 1:
        # ------------- Fused single-pass path (single N tile). ------------- #
        md_resident = (g_pad > tg) and (g_pad * t_pad * itemsize <= 2 * 1024 * 1024)
        if md_resident:
            md_spec = pl.BlockSpec((g_pad, t_pad), lambda j, k: (0, 0))
        else:
            md_spec = pl.BlockSpec((tg, t_pad), lambda j, k: (k, 0))

        cost = pl.CostEstimate(
            flops=int(4 * G * T * S + 2 * N * G * S),
            transcendentals=int(G * S),
            bytes_accessed=int(4 * (2 * G * T + 2 * T * S + N * G + N * S)),
        )

        out_padded = pl.pallas_call(
            _make_fused_kernel(md_resident, tg),
            out_shape=jax.ShapeDtypeStruct((n_pad, s_pad), jnp.float32),
            grid=(s_pad // ts, g_pad // tg),
            in_specs=[
                md_spec,                                          # M
                md_spec,                                          # -D
                pl.BlockSpec((t_pad, ts), lambda j, k: (0, j)),   # A
                pl.BlockSpec((t_pad, ts), lambda j, k: (0, j)),   # R
                pl.BlockSpec((tn, tg), lambda j, k: (0, k)),      # diag(bias)@GTS
            ],
            out_specs=pl.BlockSpec((tn, ts), lambda j, k: (0, j)),
            scratch_shapes=[pltpu.VMEM((tn, ts), jnp.float32)],
            compiler_params=pltpu.CompilerParams(
                dimension_semantics=("parallel", "arbitrary"),
                vmem_limit_bytes=vmem_limit,
            ),
            cost_estimate=cost,
        )(m_p, d_p, a_p, r_p, gts_p)
        return out_padded[:N, :S]

    # ---------------- Two-kernel split path (multiple N tiles). ---------------- #
    # Stage 1: Y produced once; M/D blocks only re-DMA when the G tile changes,
    # A/R are the small streamed operands.
    cost1 = pl.CostEstimate(
        flops=int(4 * G * T * S),
        transcendentals=int(G * S),
        bytes_accessed=int(4 * (2 * G * T + 2 * T * S) + itemsize * G * S),
    )
    y = pl.pallas_call(
        _y_kernel,
        out_shape=jax.ShapeDtypeStruct((g_pad, s_pad), cdt),
        grid=(g_pad // tg, s_pad // ts),
        in_specs=[
            pl.BlockSpec((tg, t_pad), lambda i, j: (i, 0)),   # M
            pl.BlockSpec((tg, t_pad), lambda i, j: (i, 0)),   # -D
            pl.BlockSpec((t_pad, ts), lambda i, j: (0, j)),   # A
            pl.BlockSpec((t_pad, ts), lambda i, j: (0, j)),   # R
        ],
        out_specs=pl.BlockSpec((tg, ts), lambda i, j: (i, j)),
        compiler_params=pltpu.CompilerParams(
            dimension_semantics=("parallel", "parallel"),
            vmem_limit_bytes=vmem_limit,
        ),
        cost_estimate=cost1,
    )(m_p, d_p, a_p, r_p)

    # Stage 2: plain tiled MXU matmul with f32 accumulator over G.
    # NOTE: if profiling shows exposed DMA on the streamed GTS operand, add
    # pipeline_mode=pl.Buffered(3) to its BlockSpec.
    cost2 = pl.CostEstimate(
        flops=int(2 * N * G * S),
        transcendentals=0,
        bytes_accessed=int(itemsize * (N * G + G * S) + 4 * N * S),
    )
    out_padded = pl.pallas_call(
        _gts_matmul_kernel,
        out_shape=jax.ShapeDtypeStruct((n_pad, s_pad), jnp.float32),
        grid=(n_pad // tn, s_pad // ts, g_pad // tg),
        in_specs=[
            pl.BlockSpec((tn, tg), lambda i, j, k: (i, k)),   # diag(bias)@GTS
            pl.BlockSpec((tg, ts), lambda i, j, k: (k, j)),   # Y
        ],
        out_specs=pl.BlockSpec((tn, ts), lambda i, j, k: (i, j)),
        scratch_shapes=[pltpu.VMEM((tn, ts), jnp.float32)],
        compiler_params=pltpu.CompilerParams(
            dimension_semantics=("parallel", "parallel", "arbitrary"),
            vmem_limit_bytes=vmem_limit,
        ),
        cost_estimate=cost2,
    )(gts_p, y)
    return out_padded[:N, :S]


# --------------------------------------------------------------------------- #
# Reference + self-test
# --------------------------------------------------------------------------- #
def _reference_forward_np(M, D, A, R, gene_to_seq, bias):
    M = np.asarray(M, np.float64)
    D = np.asarray(D, np.float64)
    A = np.asarray(A, np.float64)
    R = np.asarray(R, np.float64)
    gts = np.asarray(gene_to_seq, np.float64)
    b = np.asarray(bias, np.float64)
    y = (M @ A) * np.exp(-(D @ R))
    return b[:, None] * (gts @ y)


if __name__ == "__main__":
    # ---------- Test 1: TorchSolver-like structured small problem ----------
    #   T = 4 genomes, 4 rRNA gene copies each -> G = 16 genes
    #   N = 12 distinct 16S md5 sequences, S = 8 samples
    T, S, N = 4, 8, 12
    genes_per_genome = 4
    G = T * genes_per_genome

    members = np.zeros((G, T), dtype=np.float32)
    dists = np.zeros((G, T), dtype=np.float32)
    i = 0
    for g in range(T):
        pos = np.linspace(0.0, 1.0, genes_per_genome, endpoint=False,
                          dtype=np.float32)
        j = i + genes_per_genome
        members[i:j, g] = 1.0
        dists[i:j, g] = pos
        i = j

    gene_to_seq = np.zeros((N, G), dtype=np.float32)
    for gene in range(G):
        gene_to_seq[(gene * 5) % N, gene] = 1.0

    key = jax.random.PRNGKey(0)
    kA, kR, kB, k1, k2, k3, k4, k5, k6 = jax.random.split(key, 9)
    A = jax.random.uniform(kA, (T, S), dtype=jnp.float32, minval=0.1, maxval=2.0)
    R = jax.random.uniform(kR, (T, S), dtype=jnp.float32, minval=0.0, maxval=1.0)
    bias = jax.random.uniform(kB, (N,), dtype=jnp.float32, minval=0.5, maxval=1.5)

    M = jnp.asarray(members)
    D = jnp.asarray(dists)
    GTS = jnp.asarray(gene_to_seq)

    ref1 = _reference_forward_np(M, D, A, R, GTS, bias)

    # Fused single-pass path (N fits one tile).
    out1 = jax.block_until_ready(torch_solver_forward(M, D, A, R, GTS, bias))
    np.testing.assert_allclose(np.asarray(out1), ref1, rtol=1e-4, atol=1e-4)

    # Force the two-kernel split path on the same data (multiple N tiles).
    out1s = jax.block_until_ready(
        torch_solver_forward(M, D, A, R, GTS, bias, block_n=8))
    np.testing.assert_allclose(np.asarray(out1s), ref1, rtol=1e-4, atol=1e-4)

    # ---------- Test 2: multi-G-tile problem (resident M/D + G reduction) ----------
    T2, S2, N2, G2 = 8, 200, 40, 384
    M2 = jax.random.uniform(k1, (G2, T2), dtype=jnp.float32)
    D2 = jax.random.uniform(k2, (G2, T2), dtype=jnp.float32)
    A2 = jax.random.uniform(k3, (T2, S2), dtype=jnp.float32, minval=0.1, maxval=2.0)
    R2 = jax.random.uniform(k4, (T2, S2), dtype=jnp.float32)
    GTS2 = jax.random.uniform(k5, (N2, G2), dtype=jnp.float32)
    bias2 = jax.random.uniform(k6, (N2,), dtype=jnp.float32, minval=0.5, maxval=1.5)

    ref2 = _reference_forward_np(M2, D2, A2, R2, GTS2, bias2)

    # Fused path with G tiled (M / -D stay VMEM-resident, sliced per G tile).
    out2 = jax.block_until_ready(
        torch_solver_forward(M2, D2, A2, R2, GTS2, bias2, block_g=128))
    np.testing.assert_allclose(np.asarray(out2), ref2, rtol=1e-4, atol=1e-3)

    # Split path with both N and G tiled.
    out2s = jax.block_until_ready(
        torch_solver_forward(M2, D2, A2, R2, GTS2, bias2, block_g=128, block_n=16))
    np.testing.assert_allclose(np.asarray(out2s), ref2, rtol=1e-4, atol=1e-3)

    print("KERNEL_OK")
</pallas_src>

<mosaic_0001>
module attributes {stable_mosaic.version = 11 : i64} {
  func.func @kernel(%arg0: i32, %arg1: i32, %arg2: memref<16x8xf32, #tpu.memory_space<vmem>>, %arg3: memref<16x8xf32, #tpu.memory_space<vmem>>, %arg4: memref<8x128xf32, #tpu.memory_space<vmem>>, %arg5: memref<8x128xf32, #tpu.memory_space<vmem>>, %arg6: memref<16x16xf32, #tpu.memory_space<vmem>>, %arg7: memref<16x128xf32, #tpu.memory_space<vmem>>, %arg8: memref<16x128xf32, #tpu.memory_space<vmem>>) attributes {dimension_semantics = [#tpu.dimension_semantics<parallel>, #tpu.dimension_semantics<arbitrary>], iteration_bounds = array<i64: 1, 1>, scalar_prefetch = 0 : i64, scratch_operands = 1 : i64, tpu.core_type = #tpu.core_type<tc>, window_params = [{transform_indices = @transform_0, window_bounds = array<i64: 16, 8>}, {transform_indices = @transform_1, window_bounds = array<i64: 16, 8>}, {transform_indices = @transform_2, window_bounds = array<i64: 8, 128>}, {transform_indices = @transform_3, window_bounds = array<i64: 8, 128>}, {transform_indices = @transform_4, window_bounds = array<i64: 16, 16>}, {transform_indices = @transform_5, window_bounds = array<i64: 16, 128>}]} {
    %c0_i32 = arith.constant 0 : i32
    %0 = arith.cmpi eq, %arg1, %c0_i32 : i32
    %1 = arith.extui %0 : i1 to i32
    %c0_i32_0 = arith.constant 0 : i32
    %2 = arith.cmpi ne, %1, %c0_i32_0 : i32
    scf.if %2 {
      %cst_18 = arith.constant 0.000000e+00 : f32
      %19 = vector.broadcast %cst_18 : f32 to vector<16x128xf32>
      %c0_19 = arith.constant 0 : index
      %c0_20 = arith.constant 0 : index
      %20 = vector.load %arg8[%c0_19, %c0_20] : memref<16x128xf32, #tpu.memory_space<vmem>>, vector<16x128xf32>
      tpu.vector_store %arg8[%c0_19, %c0_20], %19 {strides = array<i32>} : memref<16x128xf32, #tpu.memory_space<vmem>>, vector<16x128xf32>,
    } else {
    }
    %c0 = arith.constant 0 : index
    %c0_1 = arith.constant 0 : index
    %3 = vector.load %arg2[%c0, %c0_1] : memref<16x8xf32, #tpu.memory_space<vmem>>, vector<16x8xf32>
    %c0_2 = arith.constant 0 : index
    %c0_3 = arith.constant 0 : index
    %4 = vector.load %arg3[%c0_2, %c0_3] : memref<16x8xf32, #tpu.memory_space<vmem>>, vector<16x8xf32>
    %c0_4 = arith.constant 0 : index
    %c0_5 = arith.constant 0 : index
    %5 = vector.load %arg4[%c0_4, %c0_5] : memref<8x128xf32, #tpu.memory_space<vmem>>, vector<8x128xf32>
    %cst = arith.constant dense<0.000000e+00> : vector<16x128xf32>
    %6 = tpu.matmul %3, %5, %cst {dimension_numbers = #tpu.dot_dimension_numbers<[1], [0], [0], [1], [0, 0, 1, 1], [], []>} : vector<16x8xf32>, vector<8x128xf32>, vector<16x128xf32> -> vector<16x128xf32>
    %c0_6 = arith.constant 0 : index
    %c0_7 = arith.constant 0 : index
    %7 = vector.load %arg5[%c0_6, %c0_7] : memref<8x128xf32, #tpu.memory_space<vmem>>, vector<8x128xf32>
    %cst_8 = arith.constant dense<0.000000e+00> : vector<16x128xf32>
    %8 = tpu.matmul %4, %7, %cst_8 {dimension_numbers = #tpu.dot_dimension_numbers<[1], [0], [0], [1], [0, 0, 1, 1], [], []>} : vector<16x8xf32>, vector<8x128xf32>, vector<16x128xf32> -> vector<16x128xf32>
    %9 = math.exp %8 : vector<16x128xf32>
    %10 = arith.mulf %6, %9 : vector<16x128xf32>
    %c0_9 = arith.constant 0 : index
    %c0_10 = arith.constant 0 : index
    %11 = vector.load %arg8[%c0_9, %c0_10] : memref<16x128xf32, #tpu.memory_space<vmem>>, vector<16x128xf32>
    %c0_11 = arith.constant 0 : index
    %c0_12 = arith.constant 0 : index
    %12 = vector.load %arg6[%c0_11, %c0_12] : memref<16x16xf32, #tpu.memory_space<vmem>>, vector<16x16xf32>
    %cst_13 = arith.constant dense<0.000000e+00> : vector<16x128xf32>
    %13 = tpu.matmul %12, %10, %cst_13 {dimension_numbers = #tpu.dot_dimension_numbers<[1], [0], [0], [1], [0, 0, 1, 1], [], []>} : vector<16x16xf32>, vector<16x128xf32>, vector<16x128xf32> -> vector<16x128xf32>
    %14 = arith.addf %11, %13 : vector<16x128xf32>
    %c0_14 = arith.constant 0 : index
    %c0_15 = arith.constant 0 : index
    %15 = vector.load %arg8[%c0_14, %c0_15] : memref<16x128xf32, #tpu.memory_space<vmem>>, vector<16x128xf32>
    tpu.vector_store %arg8[%c0_14, %c0_15], %14 {strides = array<i32>} : memref<16x128xf32, #tpu.memory_space<vmem>>, vector<16x128xf32>,
    %c0_i32_16 = arith.constant 0 : i32
    %16 = arith.cmpi eq, %arg1, %c0_i32_16 : i32
    %17 = arith.extui %16 : i1 to i32
    %c0_i32_17 = arith.constant 0 : i32
    %18 = arith.cmpi ne, %17, %c0_i32_17 : i32
    scf.if %18 {
      %c0_18 = arith.constant 0 : index
      %c0_19 = arith.constant 0 : index
      %19 = vector.load %arg8[%c0_18, %c0_19] : memref<16x128xf32, #tpu.memory_space<vmem>>, vector<16x128xf32>
      %c0_20 = arith.constant 0 : index
      %c0_21 = arith.constant 0 : index
      %20 = vector.load %arg7[%c0_20, %c0_21] : memref<16x128xf32, #tpu.memory_space<vmem>>, vector<16x128xf32>
      tpu.vector_store %arg7[%c0_20, %c0_21], %19 {strides = array<i32>} : memref<16x128xf32, #tpu.memory_space<vmem>>, vector<16x128xf32>,
    } else {
    }
    return
  }
  func.func @transform_0(%arg0: i32, %arg1: i32) -> (i32, i32) {
    %c0_i32 = arith.constant 0 : i32
    %c0_i32_0 = arith.constant 0 : i32
    return %arg1, %c0_i32 : i32, i32
  }
  func.func @transform_1(%arg0: i32, %arg1: i32) -> (i32, i32) {
    %c0_i32 = arith.constant 0 : i32
    %c0_i32_0 = arith.constant 0 : i32
    return %arg1, %c0_i32 : i32, i32
  }
  func.func @transform_2(%arg0: i32, %arg1: i32) -> (i32, i32) {
    %c0_i32 = arith.constant 0 : i32
    %c0_i32_0 = arith.constant 0 : i32
    return %c0_i32, %arg0 : i32, i32
  }
  func.func @transform_3(%arg0: i32, %arg1: i32) -> (i32, i32) {
    %c0_i32 = arith.constant 0 : i32
    %c0_i32_0 = arith.constant 0 : i32
    return %c0_i32, %arg0 : i32, i32
  }
  func.func @transform_4(%arg0: i32, %arg1: i32) -> (i32, i32) {
    %c0_i32 = arith.constant 0 : i32
    %c0_i32_0 = arith.constant 0 : i32
    return %c0_i32, %arg1 : i32, i32
  }
  func.func @transform_5(%arg0: i32, %arg1: i32) -> (i32, i32) {
    %c0_i32 = arith.constant 0 : i32
    %c0_i32_0 = arith.constant 0 : i32
    return %c0_i32, %arg0 : i32, i32
  }
}

</mosaic_0001>

<llo_original>
// kernel: tpu_custom_call.1
$region0: #{tpu_custom_call.1}
  #allocation0 [shape = 'u32[]', space=smem, size = 0x4, offset = 0x4, fixed_abs, tag = 'smem constant byte address 0x4 - core index']
  #allocation1 [shape = 'u32[144,128]{1,0:T(1,128)}', space=vmem, size = 0x12000, scoped, tag = 'internal scratch']
  #allocation2 [shape = 'f32[16,128]{1,0:T(8,128)}', space=vmem, size = 0x2000, scoped, tag = 'scratch operand']
  %s0 = inlined_call_operand.vmem [shape: f32[16,8], index: 0, kind: input, shape index: {}]
  %s1 = inlined_call_operand.vmem [shape: f32[16,8], index: 1, kind: input, shape index: {}]
  %s2 = inlined_call_operand.vmem [shape: f32[8,128], index: 2, kind: input, shape index: {}]
  %s3 = inlined_call_operand.vmem [shape: f32[8,128], index: 3, kind: input, shape index: {}]
  %s4 = inlined_call_operand.vmem [shape: f32[16,16], index: 4, kind: input, shape index: {}]
  %s5 = inlined_call_operand.hbm [shape: f32[16,128], index: 5, kind: output, shape index: {}]
  %s6 = sld [smem:[#allocation0]]
  $region38: #{tpu_custom_call.1} parent=0
    _
  %s8 = ssub.s32 1, %s6
  %s9 = scalar_select 0, %s8, %s6
  $region1: #{tpu_custom_call.1} parent=0
    #allocation3 [shape = 'u8[8192]{0}', space=vmem, size = 0x2000, scoped, tag = 'output window, operand 0, single buffered']
    #allocation4 [shape = 's32[1]{0}', space=sflag, size = 0x4, scoped, tag = 'scoped memory for tpu_custom_call.1']
    %10 = vsyncpa [#allocation4], 0
    // Predicated region
    $region2: #{tpu_custom_call.1} parent=1 // pred_check
      _
    $region3: #{tpu_custom_call.1} parent=1 // pred_check_branch
      %12 = sbr.rel (0) target = $region5
    $region4: #{tpu_custom_call.1} parent=1 // pred_region
      _
    $region5: #{tpu_custom_call.1} parent=1 // pred_fallthru
      _
    // Predicated region
    $region6: #{tpu_custom_call.1} parent=1 // pred_check
      _
    $region7: #{tpu_custom_call.1} parent=1 // pred_check_branch
      %14 = sbr.rel (0) target = $region9
    $region8: #{tpu_custom_call.1} parent=1 // pred_region
      _
    $region9: #{tpu_custom_call.1} parent=1 // pred_fallthru
      _
    // Predicated region
    $region10: #{tpu_custom_call.1} parent=1 // pred_check
      _
    $region11: #{tpu_custom_call.1} parent=1 // pred_check_branch
      %16 = sbr.rel (0) target = $region13
    $region12: #{tpu_custom_call.1} parent=1 // pred_region
      _
    $region13: #{tpu_custom_call.1} parent=1 // pred_fallthru
      _
    // Predicated region
    $region14: #{tpu_custom_call.1} parent=1 // pred_check
      _
    $region15: #{tpu_custom_call.1} parent=1 // pred_check_branch
      %18 = sbr.rel (0) target = $region17
    $region16: #{tpu_custom_call.1} parent=1 // pred_region
      _
    $region17: #{tpu_custom_call.1} parent=1 // pred_fallthru
      _
    // Predicated region
    $region18: #{tpu_custom_call.1} parent=1 // pred_check
      _
    $region19: #{tpu_custom_call.1} parent=1 // pred_check_branch
      %20 = sbr.rel (0) target = $region21
    $region20: #{tpu_custom_call.1} parent=1 // pred_region
      _
    $region21: #{tpu_custom_call.1} parent=1 // pred_fallthru
      _
    %p21 = scmp.eq.s32.totalorder 0, 0
    // Predicated region
    $region22: #{tpu_custom_call.1} parent=1 // pred_check
      %p22 = pneg %p21
    $region23: #{tpu_custom_call.1} parent=1 // pred_check_branch
      %24 = sbr.rel (%p22) target = $region25
    $region24: #{tpu_custom_call.1} parent=1 // pred_region
      %25 = vst [vmem:[#allocation2] sm:$0xff] 0.0
      %26 = vst [vmem:[#allocation2 + $0x8] sm:$0xff] 0.0
    $region25: #{tpu_custom_call.1} parent=1 // pred_fallthru
      _
    %v27 = vld [vmem:[%s0] sm:$0xff]
    %v28 = vld [vmem:[%s0 + $0x8] sm:$0xff]
    %v29 = vld [vmem:[%s1] sm:$0xff]
    %v30 = vld [vmem:[%s1 + $0x8] sm:$0xff]
    %v31 = vld [vmem:[%s2] sm:$0xff]
    %vm32 = vcmask 64512
    %v34 = vsel %vm32, %v27, 0
    %v37 = vsel %vm32, %v28, 0
    %39 = vmatprep.subr.mxu0 0.0
    %40 = vmatpush1.msra.mxu0 %v31
    %41 = vmatprep.subr.mxu0 0.0
    %42 = vmatpush1.msra.mxu0 0.0
    %43 = vmatprep.subr.mxu0 0.0
    %44 = vmatpush1.msra.mxu0 0.0
    %45 = vmatprep.subr.mxu0 0.0
    %46 = vmatpush1.msra.mxu0 0.0
    %47 = vmatprep.subr.mxu0 0.0
    %48 = vmatpush1.msra.mxu0 0.0
    %49 = vmatprep.subr.mxu0 0.0
    %50 = vmatpush1.msra.mxu0 0.0
    %51 = vmatprep.subr.mxu0 0.0
    %52 = vmatpush1.msra.mxu0 0.0
    %53 = vmatprep.subr.mxu0 0.0
    %54 = vmatpush1.msra.mxu0 0.0
    %55 = vmatprep.subr.mxu0 0.0
    %56 = vmatpush1.msra.mxu0 0.0
    %57 = vmatprep.subr.mxu0 0.0
    %58 = vmatpush1.msra.mxu0 0.0
    %59 = vmatprep.subr.mxu0 0.0
    %60 = vmatpush1.msra.mxu0 0.0
    %61 = vmatprep.subr.mxu0 0.0
    %62 = vmatpush1.msra.mxu0 0.0
    %63 = vmatprep.subr.mxu0 0.0
    %64 = vmatpush1.msra.mxu0 0.0
    %65 = vmatprep.subr.mxu0 0.0
    %66 = vmatpush1.msra.mxu0 0.0
    %67 = vmatprep.subr.mxu0 0.0
    %68 = vmatpush1.msra.mxu0 0.0
    %69 = vmatprep.subr.mxu0 0.0
    %70 = vmatpush1.msra.mxu0 0.0
    %71 = vmatprep.subr.mxu0 0.0
    %72 = vmatpush1.msra.mxu0 0.0
    %73 = vmatprep.subr.mxu0 0.0
    %74 = vmatpush1.msra.mxu0 0.0
    %75 = vmatprep.subr.mxu0 0.0
    %76 = vmatpush1.msra.mxu0 0.0
    %77 = vmatprep.subr.mxu0 0.0
    %78 = vmatpush1.msra.mxu0 0.0
    %79 = vmatprep.subr.mxu0 0.0
    %80 = vmatpush1.msra.mxu0 0.0
    %81 = vmatprep.subr.mxu0 0.0
    %82 = vmatpush1.msra.mxu0 0.0
    %83 = vmatprep.subr.mxu0 0.0
    %84 = vmatpush1.msra.mxu0 0.0
    %85 = vmatprep.subr.mxu0 0.0
    %86 = vmatpush1.msra.mxu0 0.0
    %87 = vmatprep.subr.mxu0 0.0
    %88 = vmatpush1.msra.mxu0 0.0
    %89 = vmatprep.subr.mxu0 0.0
    %90 = vmatpush1.msra.mxu0 0.0
    %91 = vmatprep.subr.mxu0 0.0
    %92 = vmatpush1.msra.mxu0 0.0
    %93 = vmatprep.subr.mxu0 0.0
    %94 = vmatpush1.msra.mxu0 0.0
    %95 = vmatprep.subr.mxu0 0.0
    %96 = vmatpush1.msra.mxu0 0.0
    %97 = vmatprep.subr.mxu0 0.0
    %98 = vmatpush1.msra.mxu0 0.0
    %99 = vmatprep.subr.mxu0 0.0
    %100 = vmatpush1.msra.mxu0 0.0
    %101 = vmatprep.subr.mxu0 0.0
    %102 = vmatpush1.msra.mxu0 0.0
    %103 = vmatprep.mubr.f32.mxu0 0.0
    %104 = vmatmul.mubr.f32.gmra.mrb[0].mxu0 %v34
    %v105 = vpop.f32.mrb[0].mxu0
    %v106 = vadd.f32 0.0, %v105
    %v107 = vpop.f32.mrb[0].mxu0
    %108 = vmatprep.mubr.f32.mxu0 0.0
    %109 = vmatmul.mubr.f32.gmra.mrb[0].mxu0 %v37
    %v110 = vpop.f32.mrb[0].mxu0
    %v111 = vadd.f32 0.0, %v110
    %v112 = vpop.f32.mrb[0].mxu0
    %113 = vdwg.mxu0
    %v114 = vld [vmem:[%s3] sm:$0xff]
    %v116 = vsel %vm32, %v29, 0
    %v119 = vsel %vm32, %v30, 0
    %121 = vmatprep.subr.mxu0 0.0
    %122 = vmatpush1.msra.mxu0 %v114
    %123 = vmatprep.subr.mxu0 0.0
    %124 = vmatpush1.msra.mxu0 0.0
    %125 = vmatprep.subr.mxu0 0.0
    %126 = vmatpush1.msra.mxu0 0.0
    %127 = vmatprep.subr.mxu0 0.0
    %128 = vmatpush1.msra.mxu0 0.0
    %129 = vmatprep.subr.mxu0 0.0
    %130 = vmatpush1.msra.mxu0 0.0
    %131 = vmatprep.subr.mxu0 0.0
    %132 = vmatpush1.msra.mxu0 0.0
    %133 = vmatprep.subr.mxu0 0.0
    %134 = vmatpush1.msra.mxu0 0.0
    %135 = vmatprep.subr.mxu0 0.0
    %136 = vmatpush1.msra.mxu0 0.0
    %137 = vmatprep.subr.mxu0 0.0
    %138 = vmatpush1.msra.mxu0 0.0
    %139 = vmatprep.subr.mxu0 0.0
    %140 = vmatpush1.msra.mxu0 0.0
    %141 = vmatprep.subr.mxu0 0.0
    %142 = vmatpush1.msra.mxu0 0.0
    %143 = vmatprep.subr.mxu0 0.0
    %144 = vmatpush1.msra.mxu0 0.0
    %145 = vmatprep.subr.mxu0 0.0
    %146 = vmatpush1.msra.mxu0 0.0
    %147 = vmatprep.subr.mxu0 0.0
    %148 = vmatpush1.msra.mxu0 0.0
    %149 = vmatprep.subr.mxu0 0.0
    %150 = vmatpush1.msra.mxu0 0.0
    %151 = vmatprep.subr.mxu0 0.0
    %152 = vmatpush1.msra.mxu0 0.0
    %153 = vmatprep.subr.mxu0 0.0
    %154 = vmatpush1.msra.mxu0 0.0
    %155 = vmatprep.subr.mxu0 0.0
    %156 = vmatpush1.msra.mxu0 0.0
    %157 = vmatprep.subr.mxu0 0.0
    %158 = vmatpush1.msra.mxu0 0.0
    %159 = vmatprep.subr.mxu0 0.0
    %160 = vmatpush1.msra.mxu0 0.0
    %161 = vmatprep.subr.mxu0 0.0
    %162 = vmatpush1.msra.mxu0 0.0
    %163 = vmatprep.subr.mxu0 0.0
    %164 = vmatpush1.msra.mxu0 0.0
    %165 = vmatprep.subr.mxu0 0.0
    %166 = vmatpush1.msra.mxu0 0.0
    %167 = vmatprep.subr.mxu0 0.0
    %168 = vmatpush1.msra.mxu0 0.0
    %169 = vmatprep.subr.mxu0 0.0
    %170 = vmatpush1.msra.mxu0 0.0
    %171 = vmatprep.subr.mxu0 0.0
    %172 = vmatpush1.msra.mxu0 0.0
    %173 = vmatprep.subr.mxu0 0.0
    %174 = vmatpush1.msra.mxu0 0.0
    %175 = vmatprep.subr.mxu0 0.0
    %176 = vmatpush1.msra.mxu0 0.0
    %177 = vmatprep.subr.mxu0 0.0
    %178 = vmatpush1.msra.mxu0 0.0
    %179 = vmatprep.subr.mxu0 0.0
    %180 = vmatpush1.msra.mxu0 0.0
    %181 = vmatprep.subr.mxu0 0.0
    %182 = vmatpush1.msra.mxu0 0.0
    %183 = vmatprep.subr.mxu0 0.0
    %184 = vmatpush1.msra.mxu0 0.0
    %185 = vmatprep.mubr.f32.mxu0 0.0
    %186 = vmatmul.mubr.f32.gmra.mrb[0].mxu0 %v116
    %v187 = vpop.f32.mrb[0].mxu0
    %v188 = vadd.f32 0.0, %v187
    %v189 = vpop.f32.mrb[0].mxu0
    %190 = vmatprep.mubr.f32.mxu0 0.0
    %191 = vmatmul.mubr.f32.gmra.mrb[0].mxu0 %v119
    %v192 = vpop.f32.mrb[0].mxu0
    %v193 = vadd.f32 0.0, %v192
    %v194 = vpop.f32.mrb[0].mxu0
    %195 = vdwg.mxu0
    %v196 = vmul.f32 %v188, 1.442695
    %v197 = vpow.pop %v196
    %v198 = vmul.f32 %v193, 1.442695
    %v199 = vpow.pop %v198
    %v200 = vmul.f32 %v106, %v197
    %v201 = vmul.f32 %v111, %v199
    %v202 = vld [vmem:[#allocation2] sm:$0xff]
    %v203 = vld [vmem:[#allocation2 + $0x8] sm:$0xff]
    %v204 = vld [vmem:[%s4] sm:$0xff]
    %v205 = vld [vmem:[%s4 + $0x8] sm:$0xff]
    %vm206 = vcmask 130048
    %v208 = vsel %vm206, %v204, 0
    %v211 = vsel %vm206, %v205, 0
    %213 = vmatprep.subr.mxu0 0.0
    %214 = vmatpush1.msra.mxu0 %v200
    %215 = vmatprep.subr.mxu0 0.0
    %216 = vmatpush1.msra.mxu0 %v201
    %217 = vmatprep.subr.mxu0 0.0
    %218 = vmatpush1.msra.mxu0 0.0
    %219 = vmatprep.subr.mxu0 0.0
    %220 = vmatpush1.msra.mxu0 0.0
    %221 = vmatprep.subr.mxu0 0.0
    %222 = vmatpush1.msra.mxu0 0.0
    %223 = vmatprep.subr.mxu0 0.0
    %224 = vmatpush1.msra.mxu0 0.0
    %225 = vmatprep.subr.mxu0 0.0
    %226 = vmatpush1.msra.mxu0 0.0
    %227 = vmatprep.subr.mxu0 0.0
    %228 = vmatpush1.msra.mxu0 0.0
    %229 = vmatprep.subr.mxu0 0.0
    %230 = vmatpush1.msra.mxu0 0.0
    %231 = vmatprep.subr.mxu0 0.0
    %232 = vmatpush1.msra.mxu0 0.0
    %233 = vmatprep.subr.mxu0 0.0
    %234 = vmatpush1.msra.mxu0 0.0
    %235 = vmatprep.subr.mxu0 0.0
    %236 = vmatpush1.msra.mxu0 0.0
    %237 = vmatprep.subr.mxu0 0.0
    %238 = vmatpush1.msra.mxu0 0.0
    %239 = vmatprep.subr.mxu0 0.0
    %240 = vmatpush1.msra.mxu0 0.0
    %241 = vmatprep.subr.mxu0 0.0
    %242 = vmatpush1.msra.mxu0 0.0
    %243 = vmatprep.subr.mxu0 0.0
    %244 = vmatpush1.msra.mxu0 0.0
    %245 = vmatprep.subr.mxu0 0.0
    %246 = vmatpush1.msra.mxu0 0.0
    %247 = vmatprep.subr.mxu0 0.0
    %248 = vmatpush1.msra.mxu0 0.0
    %249 = vmatprep.subr.mxu0 0.0
    %250 = vmatpush1.msra.mxu0 0.0
    %251 = vmatprep.subr.mxu0 0.0
    %252 = vmatpush1.msra.mxu0 0.0
    %253 = vmatprep.subr.mxu0 0.0
    %254 = vmatpush1.msra.mxu0 0.0
    %255 = vmatprep.subr.mxu0 0.0
    %256 = vmatpush1.msra.mxu0 0.0
    %257 = vmatprep.subr.mxu0 0.0
    %258 = vmatpush1.msra.mxu0 0.0
    %259 = vmatprep.subr.mxu0 0.0
    %260 = vmatpush1.msra.mxu0 0.0
    %261 = vmatprep.subr.mxu0 0.0
    %262 = vmatpush1.msra.mxu0 0.0
    %263 = vmatprep.subr.mxu0 0.0
    %264 = vmatpush1.msra.mxu0 0.0
    %265 = vmatprep.subr.mxu0 0.0
    %266 = vmatpush1.msra.mxu0 0.0
    %267 = vmatprep.subr.mxu0 0.0
    %268 = vmatpush1.msra.mxu0 0.0
    %269 = vmatprep.subr.mxu0 0.0
    %270 = vmatpush1.msra.mxu0 0.0
    %271 = vmatprep.subr.mxu0 0.0
    %272 = vmatpush1.msra.mxu0 0.0
    %273 = vmatprep.subr.mxu0 0.0
    %274 = vmatpush1.msra.mxu0 0.0
    %275 = vmatprep.subr.mxu0 0.0
    %276 = vmatpush1.msra.mxu0 0.0
    %277 = vmatprep.mubr.f32.mxu0 0.0
    %278 = vmatmul.mubr.f32.gmra.mrb[0].mxu0 %v208
    %v279 = vpop.f32.mrb[0].mxu0
    %v280 = vadd.f32 0.0, %v279
    %v281 = vpop.f32.mrb[0].mxu0
    %282 = vmatprep.mubr.f32.mxu0 0.0
    %283 = vmatmul.mubr.f32.gmra.mrb[0].mxu0 %v211
    %v284 = vpop.f32.mrb[0].mxu0
    %v285 = vadd.f32 0.0, %v284
    %v286 = vpop.f32.mrb[0].mxu0
    %287 = vdwg.mxu0
    %v288 = vadd.f32 %v202, %v280
    %v289 = vadd.f32 %v203, %v285
    %290 = vst [vmem:[#allocation2] sm:$0xff] %v288
    %291 = vst [vmem:[#allocation2 + $0x8] sm:$0xff] %v289
    // Predicated region
    $region26: #{tpu_custom_call.1} parent=1 // pred_check
      %p292 = pneg %p21
    $region27: #{tpu_custom_call.1} parent=1 // pred_check_branch
      %294 = sbr.rel (%p292) target = $region29
    $region28: #{tpu_custom_call.1} parent=1 // pred_region
      %v295 = vld [vmem:[#allocation2] sm:$0xff]
      %v296 = vld [vmem:[#allocation2 + $0x8] sm:$0xff]
      %297 = vst [vmem:[#allocation3] sm:$0xff] %v295
      %298 = vst [vmem:[#allocation3 + $0x8] sm:$0xff] %v296
    $region29: #{tpu_custom_call.1} parent=1 // pred_fallthru
      _
    // Predicated region
    $region30: #{tpu_custom_call.1} parent=1 // pred_check
      _
    $region31: #{tpu_custom_call.1} parent=1 // pred_check_branch
      %300 = sbr.rel (0) target = $region33
    $region32: #{tpu_custom_call.1} parent=1 // pred_region
      %s302 = ssub.s32 256, 256
      %303 = vsyncadd [#allocation4], %s302
      %s304 = sshll.u32 [#allocation3], 4
      %s305 = int_to_ptr.vmem [resolvable:$true] %s304
      %310 = dma.vmem_to_hbm [thread:$0]  %s305, 256, %s5, [#allocation4], 128, 128, 8
    $region33: #{tpu_custom_call.1} parent=1 // pred_fallthru
      _
    // Predicated region
    $region34: #{tpu_custom_call.1} parent=1 // pred_check
      _
    $region35: #{tpu_custom_call.1} parent=1 // pred_check_branch
      %312 = sbr.rel (0) target = $region37
    $region36: #{tpu_custom_call.1} parent=1 // pred_region
      %313 = dma.done [#allocation4], 256
    $region37: #{tpu_custom_call.1} parent=1 // pred_fallthru
      _
    %314 = vsyncpa [#allocation4], 1

</llo_original>
